<compile_context>
chip_gen: v7x
topology: tpu7x:2x2x1
jax: 0.10.0
libtpu: 0.0.40
codegen_flags: <defaults>
</compile_context>

<pallas_src>
import jax
import jax.numpy as jnp
from jax.experimental import pallas as pl
from jax.experimental.pallas import tpu as pltpu

# Switch to the tiled/pipelined path once the flattened row count exceeds this.
_SMALL_ROWS_THRESHOLD = 2048
_TILE_ROWS = 512


def _add_kernel(a_ref, b_ref, o_ref):
    # Pure VPU elementwise add on the whole VMEM tile.
    o_ref[...] = a_ref[...] + b_ref[...]


def pallas_add(a: jax.Array, b: jax.Array) -> jax.Array:
    assert a.shape == b.shape and a.dtype == b.dtype
    orig_shape = a.shape

    # Flatten to a 2-D slab with the channel dim (multiple of 128) last.
    rows = 1
    for d in orig_shape[:-1]:
        rows *= d
    cols = orig_shape[-1]
    a2 = a.reshape(rows, cols)
    b2 = b.reshape(rows, cols)

    if rows <= _SMALL_ROWS_THRESHOLD:
        # Small problem: no grid, no pipelining bookkeeping.  Whole operands
        # are placed in VMEM (well under the scoped limit on v5e/v6e/v7x).
        out2 = pl.pallas_call(
            _add_kernel,
            out_shape=jax.ShapeDtypeStruct((rows, cols), a.dtype),
            in_specs=[
                pl.BlockSpec(memory_space=pltpu.MemorySpace.VMEM),
                pl.BlockSpec(memory_space=pltpu.MemorySpace.VMEM),
            ],
            out_specs=pl.BlockSpec(memory_space=pltpu.MemorySpace.VMEM),
        )(a2, b2)
    else:
        # Large problem: 1-D parallel grid over rows, 512-row lane-dense tiles,
        # default double-buffered BlockSpec pipelining overlaps DMA and compute.
        tr = _TILE_ROWS
        out2 = pl.pallas_call(
            _add_kernel,
            out_shape=jax.ShapeDtypeStruct((rows, cols), a.dtype),
            grid=(pl.cdiv(rows, tr),),
            in_specs=[
                pl.BlockSpec((tr, cols), lambda i: (i, 0)),
                pl.BlockSpec((tr, cols), lambda i: (i, 0)),
            ],
            out_specs=pl.BlockSpec((tr, cols), lambda i: (i, 0)),
            compiler_params=pltpu.CompilerParams(
                dimension_semantics=("parallel",)
            ),
        )(a2, b2)

    return out2.reshape(orig_shape)


if __name__ == "__main__":
    key = jax.random.PRNGKey(0)
    k1, k2 = jax.random.split(key)
    # Shapes consistent with the module's forward: [1, 14, 14, 384]
    x471 = jax.random.normal(k1, (1, 14, 14, 384), dtype=jnp.float32)
    x478 = jax.random.normal(k2, (1, 14, 14, 384), dtype=jnp.float32)

    # Reference computed first (plain JAX add).
    ref = x471 + x478

    out = pallas_add(x471, x478)
    jax.block_until_ready(out)

    assert out.shape == (1, 14, 14, 384)
    assert jnp.allclose(out, ref, atol=1e-6), "mismatch vs reference add"

    print("KERNEL_OK")
</pallas_src>

<mosaic_0001>
module attributes {stable_mosaic.version = 11 : i64} {
  func.func @_add_kernel(%arg0: memref<196x384xf32, #tpu.memory_space<vmem>>, %arg1: memref<196x384xf32, #tpu.memory_space<vmem>>, %arg2: memref<196x384xf32, #tpu.memory_space<vmem>>) attributes {dimension_semantics = [], scalar_prefetch = 0 : i64, scratch_operands = 0 : i64, tpu.core_type = #tpu.core_type<tc>} {
    %c0 = arith.constant 0 : index
    %c0_0 = arith.constant 0 : index
    %0 = vector.load %arg0[%c0, %c0_0] : memref<196x384xf32, #tpu.memory_space<vmem>>, vector<196x384xf32>
    %c0_1 = arith.constant 0 : index
    %c0_2 = arith.constant 0 : index
    %1 = vector.load %arg1[%c0_1, %c0_2] : memref<196x384xf32, #tpu.memory_space<vmem>>, vector<196x384xf32>
    %2 = arith.addf %0, %1 : vector<196x384xf32>
    %c0_3 = arith.constant 0 : index
    %c0_4 = arith.constant 0 : index
    %3 = vector.load %arg2[%c0_3, %c0_4] : memref<196x384xf32, #tpu.memory_space<vmem>>, vector<196x384xf32>
    tpu.vector_store %arg2[%c0_3, %c0_4], %2 {strides = array<i32>} : memref<196x384xf32, #tpu.memory_space<vmem>>, vector<196x384xf32>,
    return
  }
}

</mosaic_0001>

<llo_original>
// kernel: tpu_custom_call.1
$region0: #{tpu_custom_call.1}
  #allocation0 [shape = 'u32[]', space=smem, size = 0x4, offset = 0x4, fixed_abs, tag = 'smem constant byte address 0x4 - core index']
  #allocation1 [shape = 'u32[144,128]{1,0:T(1,128)}', space=vmem, size = 0x12000, scoped, tag = 'internal scratch']
  %s0 = inlined_call_operand.hbm [shape: f32[196,384], index: 0, kind: input, shape index: {}]
  %s1 = inlined_call_operand.hbm [shape: f32[196,384], index: 1, kind: input, shape index: {}]
  %s2 = inlined_call_operand.hbm [shape: f32[196,384], index: 2, kind: output, shape index: {}]
  %s3 = sld [smem:[#allocation0]]
  $region26: #{tpu_custom_call.1} parent=0
    _
  %s5 = ssub.s32 1, %s3
  %s6 = scalar_select 0, %s5, %s3
  $region1: #{tpu_custom_call.1} parent=0
    #allocation2 [shape = 'u8[307200]{0}', space=vmem, size = 0x4b000, scoped, tag = 'input window, operand 0, single buffered']
    #allocation3 [shape = 's32[1]{0}', space=sflag, size = 0x4, scoped, tag = 'scoped memory for tpu_custom_call.1']
    #allocation4 [shape = 's32[1]{0}', space=sflag, size = 0x4, scoped, tag = 'scoped memory for tpu_custom_call.1']
    #allocation5 [shape = 'u8[307200]{0}', space=vmem, size = 0x4b000, scoped, tag = 'input window, operand 1, single buffered']
    #allocation6 [shape = 's32[1]{0}', space=sflag, size = 0x4, scoped, tag = 'scoped memory for tpu_custom_call.1']
    #allocation7 [shape = 'u8[307200]{0}', space=vmem, size = 0x4b000, scoped, tag = 'output window, operand 0, single buffered']
    %7 = vsyncpa [#allocation3], 0
    %8 = vsyncpa [#allocation6], 0
    %9 = vsyncpa [#allocation4], 0
    // Predicated region
    $region2: #{tpu_custom_call.1} parent=1 // pred_check
      _
    $region3: #{tpu_custom_call.1} parent=1 // pred_check_branch
      %11 = sbr.rel (0) target = $region5
    $region4: #{tpu_custom_call.1} parent=1 // pred_region
      %s13 = ssub.s32 9600, 9600
      %14 = vsyncadd [#allocation3], %s13
      %s15 = sshll.u32 [#allocation2], 4
      %s16 = int_to_ptr.vmem [resolvable:$true] %s15
      %21 = dma.hbm_to_vmem [thread:$0]  %s0, 9600, %s16, [#allocation3], 384, 384, 24
    $region5: #{tpu_custom_call.1} parent=1 // pred_fallthru
      _
    // Predicated region
    $region6: #{tpu_custom_call.1} parent=1 // pred_check
      _
    $region7: #{tpu_custom_call.1} parent=1 // pred_check_branch
      %23 = sbr.rel (0) target = $region9
    $region8: #{tpu_custom_call.1} parent=1 // pred_region
      %s25 = ssub.s32 9600, 9600
      %26 = vsyncadd [#allocation6], %s25
      %s27 = sshll.u32 [#allocation5], 4
      %s28 = int_to_ptr.vmem [resolvable:$true] %s27
      %33 = dma.hbm_to_vmem [thread:$0]  %s1, 9600, %s28, [#allocation6], 384, 384, 24
    $region9: #{tpu_custom_call.1} parent=1 // pred_fallthru
      _
    // Predicated region
    $region10: #{tpu_custom_call.1} parent=1 // pred_check
      _
    $region11: #{tpu_custom_call.1} parent=1 // pred_check_branch
      %35 = sbr.rel (0) target = $region13
    $region12: #{tpu_custom_call.1} parent=1 // pred_region
      %36 = dma.done [#allocation3], 9600
    $region13: #{tpu_custom_call.1} parent=1 // pred_fallthru
      _
    // Predicated region
    $region14: #{tpu_custom_call.1} parent=1 // pred_check
      _
    $region15: #{tpu_custom_call.1} parent=1 // pred_check_branch
      %38 = sbr.rel (0) target = $region17
    $region16: #{tpu_custom_call.1} parent=1 // pred_region
      %39 = dma.done [#allocation6], 9600
    $region17: #{tpu_custom_call.1} parent=1 // pred_fallthru
      _
    %v40 = vld [vmem:[#allocation2] sm:$0xff]
    %v41 = vld [vmem:[#allocation2 + $0x8] sm:$0xff]
    %v42 = vld [vmem:[#allocation2 + $0x10] sm:$0xff]
    %v43 = vld [vmem:[#allocation2 + $0x18] sm:$0xff]
    %v44 = vld [vmem:[#allocation2 + $0x20] sm:$0xff]
    %v45 = vld [vmem:[#allocation2 + $0x28] sm:$0xff]
    %v46 = vld [vmem:[#allocation2 + $0x30] sm:$0xff]
    %v47 = vld [vmem:[#allocation2 + $0x38] sm:$0xff]
    %v48 = vld [vmem:[#allocation2 + $0x40] sm:$0xff]
    %v49 = vld [vmem:[#allocation2 + $0x48] sm:$0xff]
    %v50 = vld [vmem:[#allocation2 + $0x50] sm:$0xff]
    %v51 = vld [vmem:[#allocation2 + $0x58] sm:$0xff]
    %v52 = vld [vmem:[#allocation2 + $0x60] sm:$0xff]
    %v53 = vld [vmem:[#allocation2 + $0x68] sm:$0xff]
    %v54 = vld [vmem:[#allocation2 + $0x70] sm:$0xff]
    %v55 = vld [vmem:[#allocation2 + $0x78] sm:$0xff]
    %v56 = vld [vmem:[#allocation2 + $0x80] sm:$0xff]
    %v57 = vld [vmem:[#allocation2 + $0x88] sm:$0xff]
    %v58 = vld [vmem:[#allocation2 + $0x90] sm:$0xff]
    %v59 = vld [vmem:[#allocation2 + $0x98] sm:$0xff]
    %v60 = vld [vmem:[#allocation2 + $0xa0] sm:$0xff]
    %v61 = vld [vmem:[#allocation2 + $0xa8] sm:$0xff]
    %v62 = vld [vmem:[#allocation2 + $0xb0] sm:$0xff]
    %v63 = vld [vmem:[#allocation2 + $0xb8] sm:$0xff]
    %v64 = vld [vmem:[#allocation2 + $0xc0] sm:$0xff]
    %v65 = vld [vmem:[#allocation2 + $0xc8] sm:$0xff]
    %v66 = vld [vmem:[#allocation2 + $0xd0] sm:$0xff]
    %v67 = vld [vmem:[#allocation2 + $0xd8] sm:$0xff]
    %v68 = vld [vmem:[#allocation2 + $0xe0] sm:$0xff]
    %v69 = vld [vmem:[#allocation2 + $0xe8] sm:$0xff]
    %v70 = vld [vmem:[#allocation2 + $0xf0] sm:$0xff]
    %v71 = vld [vmem:[#allocation2 + $0xf8] sm:$0xff]
    %v72 = vld [vmem:[#allocation2 + $0x100] sm:$0xff]
    %v73 = vld [vmem:[#allocation2 + $0x108] sm:$0xff]
    %v74 = vld [vmem:[#allocation2 + $0x110] sm:$0xff]
    %v75 = vld [vmem:[#allocation2 + $0x118] sm:$0xff]
    %v76 = vld [vmem:[#allocation2 + $0x120] sm:$0xff]
    %v77 = vld [vmem:[#allocation2 + $0x128] sm:$0xff]
    %v78 = vld [vmem:[#allocation2 + $0x130] sm:$0xff]
    %v79 = vld [vmem:[#allocation2 + $0x138] sm:$0xff]
    %v80 = vld [vmem:[#allocation2 + $0x140] sm:$0xff]
    %v81 = vld [vmem:[#allocation2 + $0x148] sm:$0xff]
    %v82 = vld [vmem:[#allocation2 + $0x150] sm:$0xff]
    %v83 = vld [vmem:[#allocation2 + $0x158] sm:$0xff]
    %v84 = vld [vmem:[#allocation2 + $0x160] sm:$0xff]
    %v85 = vld [vmem:[#allocation2 + $0x168] sm:$0xff]
    %v86 = vld [vmem:[#allocation2 + $0x170] sm:$0xff]
    %v87 = vld [vmem:[#allocation2 + $0x178] sm:$0xff]
    %v88 = vld [vmem:[#allocation2 + $0x180] sm:$0xff]
    %v89 = vld [vmem:[#allocation2 + $0x188] sm:$0xff]
    %v90 = vld [vmem:[#allocation2 + $0x190] sm:$0xff]
    %v91 = vld [vmem:[#allocation2 + $0x198] sm:$0xff]
    %v92 = vld [vmem:[#allocation2 + $0x1a0] sm:$0xff]
    %v93 = vld [vmem:[#allocation2 + $0x1a8] sm:$0xff]
    %v94 = vld [vmem:[#allocation2 + $0x1b0] sm:$0xff]
    %v95 = vld [vmem:[#allocation2 + $0x1b8] sm:$0xff]
    %v96 = vld [vmem:[#allocation2 + $0x1c0] sm:$0xff]
    %v97 = vld [vmem:[#allocation2 + $0x1c8] sm:$0xff]
    %v98 = vld [vmem:[#allocation2 + $0x1d0] sm:$0xff]
    %v99 = vld [vmem:[#allocation2 + $0x1d8] sm:$0xff]
    %v100 = vld [vmem:[#allocation2 + $0x1e0] sm:$0xff]
    %v101 = vld [vmem:[#allocation2 + $0x1e8] sm:$0xff]
    %v102 = vld [vmem:[#allocation2 + $0x1f0] sm:$0xff]
    %v103 = vld [vmem:[#allocation2 + $0x1f8] sm:$0xff]
    %v104 = vld [vmem:[#allocation2 + $0x200] sm:$0xff]
    %v105 = vld [vmem:[#allocation2 + $0x208] sm:$0xff]
    %v106 = vld [vmem:[#allocation2 + $0x210] sm:$0xff]
    %v107 = vld [vmem:[#allocation2 + $0x218] sm:$0xff]
    %v108 = vld [vmem:[#allocation2 + $0x220] sm:$0xff]
    %v109 = vld [vmem:[#allocation2 + $0x228] sm:$0xff]
    %v110 = vld [vmem:[#allocation2 + $0x230] sm:$0xff]
    %v111 = vld [vmem:[#allocation2 + $0x238] sm:$0xff]
    %v112 = vld [vmem:[#allocation2 + $0x240] sm:$0xf]
    %v113 = vld [vmem:[#allocation2 + $0x248] sm:$0xf]
    %v114 = vld [vmem:[#allocation2 + $0x250] sm:$0xf]
    %v115 = vld [vmem:[#allocation5] sm:$0xff]
    %v116 = vld [vmem:[#allocation5 + $0x8] sm:$0xff]
    %v117 = vld [vmem:[#allocation5 + $0x10] sm:$0xff]
    %v118 = vld [vmem:[#allocation5 + $0x18] sm:$0xff]
    %v119 = vld [vmem:[#allocation5 + $0x20] sm:$0xff]
    %v120 = vld [vmem:[#allocation5 + $0x28] sm:$0xff]
    %v121 = vld [vmem:[#allocation5 + $0x30] sm:$0xff]
    %v122 = vld [vmem:[#allocation5 + $0x38] sm:$0xff]
    %v123 = vld [vmem:[#allocation5 + $0x40] sm:$0xff]
    %v124 = vld [vmem:[#allocation5 + $0x48] sm:$0xff]
    %v125 = vld [vmem:[#allocation5 + $0x50] sm:$0xff]
    %v126 = vld [vmem:[#allocation5 + $0x58] sm:$0xff]
    %v127 = vld [vmem:[#allocation5 + $0x60] sm:$0xff]
    %v128 = vld [vmem:[#allocation5 + $0x68] sm:$0xff]
    %v129 = vld [vmem:[#allocation5 + $0x70] sm:$0xff]
    %v130 = vld [vmem:[#allocation5 + $0x78] sm:$0xff]
    %v131 = vld [vmem:[#allocation5 + $0x80] sm:$0xff]
    %v132 = vld [vmem:[#allocation5 + $0x88] sm:$0xff]
    %v133 = vld [vmem:[#allocation5 + $0x90] sm:$0xff]
    %v134 = vld [vmem:[#allocation5 + $0x98] sm:$0xff]
    %v135 = vld [vmem:[#allocation5 + $0xa0] sm:$0xff]
    %v136 = vld [vmem:[#allocation5 + $0xa8] sm:$0xff]
    %v137 = vld [vmem:[#allocation5 + $0xb0] sm:$0xff]
    %v138 = vld [vmem:[#allocation5 + $0xb8] sm:$0xff]
    %v139 = vld [vmem:[#allocation5 + $0xc0] sm:$0xff]
    %v140 = vld [vmem:[#allocation5 + $0xc8] sm:$0xff]
    %v141 = vld [vmem:[#allocation5 + $0xd0] sm:$0xff]
    %v142 = vld [vmem:[#allocation5 + $0xd8] sm:$0xff]
    %v143 = vld [vmem:[#allocation5 + $0xe0] sm:$0xff]
    %v144 = vld [vmem:[#allocation5 + $0xe8] sm:$0xff]
    %v145 = vld [vmem:[#allocation5 + $0xf0] sm:$0xff]
    %v146 = vld [vmem:[#allocation5 + $0xf8] sm:$0xff]
    %v147 = vld [vmem:[#allocation5 + $0x100] sm:$0xff]
    %v148 = vld [vmem:[#allocation5 + $0x108] sm:$0xff]
    %v149 = vld [vmem:[#allocation5 + $0x110] sm:$0xff]
    %v150 = vld [vmem:[#allocation5 + $0x118] sm:$0xff]
    %v151 = vld [vmem:[#allocation5 + $0x120] sm:$0xff]
    %v152 = vld [vmem:[#allocation5 + $0x128] sm:$0xff]
    %v153 = vld [vmem:[#allocation5 + $0x130] sm:$0xff]
    %v154 = vld [vmem:[#allocation5 + $0x138] sm:$0xff]
    %v155 = vld [vmem:[#allocation5 + $0x140] sm:$0xff]
    %v156 = vld [vmem:[#allocation5 + $0x148] sm:$0xff]
    %v157 = vld [vmem:[#allocation5 + $0x150] sm:$0xff]
    %v158 = vld [vmem:[#allocation5 + $0x158] sm:$0xff]
    %v159 = vld [vmem:[#allocation5 + $0x160] sm:$0xff]
    %v160 = vld [vmem:[#allocation5 + $0x168] sm:$0xff]
    %v161 = vld [vmem:[#allocation5 + $0x170] sm:$0xff]
    %v162 = vld [vmem:[#allocation5 + $0x178] sm:$0xff]
    %v163 = vld [vmem:[#allocation5 + $0x180] sm:$0xff]
    %v164 = vld [vmem:[#allocation5 + $0x188] sm:$0xff]
    %v165 = vld [vmem:[#allocation5 + $0x190] sm:$0xff]
    %v166 = vld [vmem:[#allocation5 + $0x198] sm:$0xff]
    %v167 = vld [vmem:[#allocation5 + $0x1a0] sm:$0xff]
    %v168 = vld [vmem:[#allocation5 + $0x1a8] sm:$0xff]
    %v169 = vld [vmem:[#allocation5 + $0x1b0] sm:$0xff]
    %v170 = vld [vmem:[#allocation5 + $0x1b8] sm:$0xff]
    %v171 = vld [vmem:[#allocation5 + $0x1c0] sm:$0xff]
    %v172 = vld [vmem:[#allocation5 + $0x1c8] sm:$0xff]
    %v173 = vld [vmem:[#allocation5 + $0x1d0] sm:$0xff]
    %v174 = vld [vmem:[#allocation5 + $0x1d8] sm:$0xff]
    %v175 = vld [vmem:[#allocation5 + $0x1e0] sm:$0xff]
    %v176 = vld [vmem:[#allocation5 + $0x1e8] sm:$0xff]
    %v177 = vld [vmem:[#allocation5 + $0x1f0] sm:$0xff]
    %v178 = vld [vmem:[#allocation5 + $0x1f8] sm:$0xff]
    %v179 = vld [vmem:[#allocation5 + $0x200] sm:$0xff]
    %v180 = vld [vmem:[#allocation5 + $0x208] sm:$0xff]
    %v181 = vld [vmem:[#allocation5 + $0x210] sm:$0xff]
    %v182 = vld [vmem:[#allocation5 + $0x218] sm:$0xff]
    %v183 = vld [vmem:[#allocation5 + $0x220] sm:$0xff]
    %v184 = vld [vmem:[#allocation5 + $0x228] sm:$0xff]
    %v185 = vld [vmem:[#allocation5 + $0x230] sm:$0xff]
    %v186 = vld [vmem:[#allocation5 + $0x238] sm:$0xff]
    %v187 = vld [vmem:[#allocation5 + $0x240] sm:$0xf]
    %v188 = vld [vmem:[#allocation5 + $0x248] sm:$0xf]
    %v189 = vld [vmem:[#allocation5 + $0x250] sm:$0xf]
    %v190 = vadd.f32 %v40, %v115
    %v191 = vadd.f32 %v41, %v116
    %v192 = vadd.f32 %v42, %v117
    %v193 = vadd.f32 %v43, %v118
    %v194 = vadd.f32 %v44, %v119
    %v195 = vadd.f32 %v45, %v120
    %v196 = vadd.f32 %v46, %v121
    %v197 = vadd.f32 %v47, %v122
    %v198 = vadd.f32 %v48, %v123
    %v199 = vadd.f32 %v49, %v124
    %v200 = vadd.f32 %v50, %v125
    %v201 = vadd.f32 %v51, %v126
    %v202 = vadd.f32 %v52, %v127
    %v203 = vadd.f32 %v53, %v128
    %v204 = vadd.f32 %v54, %v129
    %v205 = vadd.f32 %v55, %v130
    %v206 = vadd.f32 %v56, %v131
    %v207 = vadd.f32 %v57, %v132
    %v208 = vadd.f32 %v58, %v133
    %v209 = vadd.f32 %v59, %v134
    %v210 = vadd.f32 %v60, %v135
    %v211 = vadd.f32 %v61, %v136
    %v212 = vadd.f32 %v62, %v137
    %v213 = vadd.f32 %v63, %v138
    %v214 = vadd.f32 %v64, %v139
    %v215 = vadd.f32 %v65, %v140
    %v216 = vadd.f32 %v66, %v141
    %v217 = vadd.f32 %v67, %v142
    %v218 = vadd.f32 %v68, %v143
    %v219 = vadd.f32 %v69, %v144
    %v220 = vadd.f32 %v70, %v145
    %v221 = vadd.f32 %v71, %v146
    %v222 = vadd.f32 %v72, %v147
    %v223 = vadd.f32 %v73, %v148
    %v224 = vadd.f32 %v74, %v149
    %v225 = vadd.f32 %v75, %v150
    %v226 = vadd.f32 %v76, %v151
    %v227 = vadd.f32 %v77, %v152
    %v228 = vadd.f32 %v78, %v153
    %v229 = vadd.f32 %v79, %v154
    %v230 = vadd.f32 %v80, %v155
    %v231 = vadd.f32 %v81, %v156
    %v232 = vadd.f32 %v82, %v157
    %v233 = vadd.f32 %v83, %v158
    %v234 = vadd.f32 %v84, %v159
    %v235 = vadd.f32 %v85, %v160
    %v236 = vadd.f32 %v86, %v161
    %v237 = vadd.f32 %v87, %v162
    %v238 = vadd.f32 %v88, %v163
    %v239 = vadd.f32 %v89, %v164
    %v240 = vadd.f32 %v90, %v165
    %v241 = vadd.f32 %v91, %v166
    %v242 = vadd.f32 %v92, %v167
    %v243 = vadd.f32 %v93, %v168
    %v244 = vadd.f32 %v94, %v169
    %v245 = vadd.f32 %v95, %v170
    %v246 = vadd.f32 %v96, %v171
    %v247 = vadd.f32 %v97, %v172
    %v248 = vadd.f32 %v98, %v173
    %v249 = vadd.f32 %v99, %v174
    %v250 = vadd.f32 %v100, %v175
    %v251 = vadd.f32 %v101, %v176
    %v252 = vadd.f32 %v102, %v177
    %v253 = vadd.f32 %v103, %v178
    %v254 = vadd.f32 %v104, %v179
    %v255 = vadd.f32 %v105, %v180
    %v256 = vadd.f32 %v106, %v181
    %v257 = vadd.f32 %v107, %v182
    %v258 = vadd.f32 %v108, %v183
    %v259 = vadd.f32 %v109, %v184
    %v260 = vadd.f32 %v110, %v185
    %v261 = vadd.f32 %v111, %v186
    %v262 = vadd.f32 %v112, %v187
    %v263 = vadd.f32 %v113, %v188
    %v264 = vadd.f32 %v114, %v189
    %265 = vst [vmem:[#allocation7] sm:$0xff] %v190
    %266 = vst [vmem:[#allocation7 + $0x8] sm:$0xff] %v191
    %267 = vst [vmem:[#allocation7 + $0x10] sm:$0xff] %v192
    %268 = vst [vmem:[#allocation7 + $0x18] sm:$0xff] %v193
    %269 = vst [vmem:[#allocation7 + $0x20] sm:$0xff] %v194
    %270 = vst [vmem:[#allocation7 + $0x28] sm:$0xff] %v195
    %271 = vst [vmem:[#allocation7 + $0x30] sm:$0xff] %v196
    %272 = vst [vmem:[#allocation7 + $0x38] sm:$0xff] %v197
    %273 = vst [vmem:[#allocation7 + $0x40] sm:$0xff] %v198
    %274 = vst [vmem:[#allocation7 + $0x48] sm:$0xff] %v199
    %275 = vst [vmem:[#allocation7 + $0x50] sm:$0xff] %v200
    %276 = vst [vmem:[#allocation7 + $0x58] sm:$0xff] %v201
    %277 = vst [vmem:[#allocation7 + $0x60] sm:$0xff] %v202
    %278 = vst [vmem:[#allocation7 + $0x68] sm:$0xff] %v203
    %279 = vst [vmem:[#allocation7 + $0x70] sm:$0xff] %v204
    %280 = vst [vmem:[#allocation7 + $0x78] sm:$0xff] %v205
    %281 = vst [vmem:[#allocation7 + $0x80] sm:$0xff] %v206
    %282 = vst [vmem:[#allocation7 + $0x88] sm:$0xff] %v207
    %283 = vst [vmem:[#allocation7 + $0x90] sm:$0xff] %v208
    %284 = vst [vmem:[#allocation7 + $0x98] sm:$0xff] %v209
    %285 = vst [vmem:[#allocation7 + $0xa0] sm:$0xff] %v210
    %286 = vst [vmem:[#allocation7 + $0xa8] sm:$0xff] %v211
    %287 = vst [vmem:[#allocation7 + $0xb0] sm:$0xff] %v212
    %288 = vst [vmem:[#allocation7 + $0xb8] sm:$0xff] %v213
    %289 = vst [vmem:[#allocation7 + $0xc0] sm:$0xff] %v214
    %290 = vst [vmem:[#allocation7 + $0xc8] sm:$0xff] %v215
    %291 = vst [vmem:[#allocation7 + $0xd0] sm:$0xff] %v216
    %292 = vst [vmem:[#allocation7 + $0xd8] sm:$0xff] %v217
    %293 = vst [vmem:[#allocation7 + $0xe0] sm:$0xff] %v218
    %294 = vst [vmem:[#allocation7 + $0xe8] sm:$0xff] %v219
    %295 = vst [vmem:[#allocation7 + $0xf0] sm:$0xff] %v220
    %296 = vst [vmem:[#allocation7 + $0xf8] sm:$0xff] %v221
    %297 = vst [vmem:[#allocation7 + $0x100] sm:$0xff] %v222
    %298 = vst [vmem:[#allocation7 + $0x108] sm:$0xff] %v223
    %299 = vst [vmem:[#allocation7 + $0x110] sm:$0xff] %v224
    %300 = vst [vmem:[#allocation7 + $0x118] sm:$0xff] %v225
    %301 = vst [vmem:[#allocation7 + $0x120] sm:$0xff] %v226
    %302 = vst [vmem:[#allocation7 + $0x128] sm:$0xff] %v227
    %303 = vst [vmem:[#allocation7 + $0x130] sm:$0xff] %v228
    %304 = vst [vmem:[#allocation7 + $0x138] sm:$0xff] %v229
    %305 = vst [vmem:[#allocation7 + $0x140] sm:$0xff] %v230
    %306 = vst [vmem:[#allocation7 + $0x148] sm:$0xff] %v231
    %307 = vst [vmem:[#allocation7 + $0x150] sm:$0xff] %v232
    %308 = vst [vmem:[#allocation7 + $0x158] sm:$0xff] %v233
    %309 = vst [vmem:[#allocation7 + $0x160] sm:$0xff] %v234
    %310 = vst [vmem:[#allocation7 + $0x168] sm:$0xff] %v235
    %311 = vst [vmem:[#allocation7 + $0x170] sm:$0xff] %v236
    %312 = vst [vmem:[#allocation7 + $0x178] sm:$0xff] %v237
    %313 = vst [vmem:[#allocation7 + $0x180] sm:$0xff] %v238
    %314 = vst [vmem:[#allocation7 + $0x188] sm:$0xff] %v239
    %315 = vst [vmem:[#allocation7 + $0x190] sm:$0xff] %v240
    %316 = vst [vmem:[#allocation7 + $0x198] sm:$0xff] %v241
    %317 = vst [vmem:[#allocation7 + $0x1a0] sm:$0xff] %v242
    %318 = vst [vmem:[#allocation7 + $0x1a8] sm:$0xff] %v243
    %319 = vst [vmem:[#allocation7 + $0x1b0] sm:$0xff] %v244
    %320 = vst [vmem:[#allocation7 + $0x1b8] sm:$0xff] %v245
    %321 = vst [vmem:[#allocation7 + $0x1c0] sm:$0xff] %v246
    %322 = vst [vmem:[#allocation7 + $0x1c8] sm:$0xff] %v247
    %323 = vst [vmem:[#allocation7 + $0x1d0] sm:$0xff] %v248
    %324 = vst [vmem:[#allocation7 + $0x1d8] sm:$0xff] %v249
    %325 = vst [vmem:[#allocation7 + $0x1e0] sm:$0xff] %v250
    %326 = vst [vmem:[#allocation7 + $0x1e8] sm:$0xff] %v251
    %327 = vst [vmem:[#allocation7 + $0x1f0] sm:$0xff] %v252
    %328 = vst [vmem:[#allocation7 + $0x1f8] sm:$0xff] %v253
    %329 = vst [vmem:[#allocation7 + $0x200] sm:$0xff] %v254
    %330 = vst [vmem:[#allocation7 + $0x208] sm:$0xff] %v255
    %331 = vst [vmem:[#allocation7 + $0x210] sm:$0xff] %v256
    %332 = vst [vmem:[#allocation7 + $0x218] sm:$0xff] %v257
    %333 = vst [vmem:[#allocation7 + $0x220] sm:$0xff] %v258
    %334 = vst [vmem:[#allocation7 + $0x228] sm:$0xff] %v259
    %335 = vst [vmem:[#allocation7 + $0x230] sm:$0xff] %v260
    %336 = vst [vmem:[#allocation7 + $0x238] sm:$0xff] %v261
    %337 = vst [vmem:[#allocation7 + $0x240] sm:$0xf] %v262
    %338 = vst [vmem:[#allocation7 + $0x248] sm:$0xf] %v263
    %339 = vst [vmem:[#allocation7 + $0x250] sm:$0xf] %v264
    // Predicated region
    $region18: #{tpu_custom_call.1} parent=1 // pred_check
      _
    $region19: #{tpu_custom_call.1} parent=1 // pred_check_branch
      %341 = sbr.rel (0) target = $region21
    $region20: #{tpu_custom_call.1} parent=1 // pred_region
      %s343 = ssub.s32 9600, 9600
      %344 = vsyncadd [#allocation4], %s343
      %s345 = sshll.u32 [#allocation7], 4
      %s346 = int_to_ptr.vmem [resolvable:$true] %s345
      %351 = dma.vmem_to_hbm [thread:$0]  %s346, 9600, %s2, [#allocation4], 384, 384, 24
    $region21: #{tpu_custom_call.1} parent=1 // pred_fallthru
      _
    // Predicated region
    $region22: #{tpu_custom_call.1} parent=1 // pred_check
      _
    $region23: #{tpu_custom_call.1} parent=1 // pred_check_branch
      %353 = sbr.rel (0) target = $region25
    $region24: #{tpu_custom_call.1} parent=1 // pred_region
      %354 = dma.done [#allocation4], 9600
    $region25: #{tpu_custom_call.1} parent=1 // pred_fallthru
      _
    %355 = vsyncpa [#allocation3], 1
    %356 = vsyncpa [#allocation6], 1
    %357 = vsyncpa [#allocation4], 1

</llo_original>
